<compile_context>
chip_gen: v6e
topology: v6e:2x2x1
jax: 0.10.0
libtpu: 0.0.40
codegen_flags: <defaults>
</compile_context>

<pallas_src>
import jax
import jax.numpy as jnp
import numpy as np
from jax.experimental import pallas as pl
from jax.experimental.pallas import tpu as pltpu


def _mean_pool_kernel(h_ref, m_ref, o_ref, cnt_ref):
    """One (batch-tile, hidden-tile, seq-tile) grid step of masked mean pooling.

    h_ref:   (TB, TS, TH)  hidden-state tile (native dtype, e.g. f32/bf16)
    m_ref:   (TB, TS)      attention-mask tile (int/float), lane-dense
    o_ref:   (TB, TH)      f32 output tile; running masked sum across seq tiles
    cnt_ref: (TB, 1)       f32 scratch: running valid-token count per row
    """
    s = pl.program_id(2)

    @pl.when(s == 0)
    def _init():
        o_ref[...] = jnp.zeros_like(o_ref)
        cnt_ref[...] = jnp.zeros_like(cnt_ref)

    h = h_ref[...].astype(jnp.float32)            # (TB, TS, TH)
    m = m_ref[...].astype(jnp.float32)            # (TB, TS)

    # VPU multiply + reduce over the sequence tile, accumulated in f32.
    # (The mask lane->sublane relayout rides the XLU slot; no MXU involved.)
    o_ref[...] += jnp.sum(h * m[:, :, None], axis=1)
    cnt_ref[...] += jnp.sum(m, axis=1, keepdims=True)

    @pl.when(s == pl.num_programs(2) - 1)
    def _finalize():
        # torch.clamp(sum_mask, min=1e-9) then divide -> masked mean.
        o_ref[...] = o_ref[...] / jnp.maximum(cnt_ref[...], 1e-9)


def _divisor_tiles(n, unit):
    """Divisors of n that are multiples of `unit`, largest first; [n] fallback."""
    if n % unit != 0:
        return [n]
    return [d for d in range(n, unit - 1, -unit) if n % d == 0]


def _vmem_info():
    """(per-hidden-buffer byte budget, physical VMEM capacity)."""
    try:
        cap = int(pltpu.get_tpu_info().vmem_capacity_bytes)
    except Exception:
        cap = 64 * 1024 * 1024          # conservative: v7x per-TensorCore VMEM
    if cap <= 64 * 1024 * 1024:         # v7x-class: 64 MiB per TC
        budget = 5 * 1024 * 1024
    else:                               # v5e / v6e: 128 MiB
        budget = 14 * 1024 * 1024
    return budget, cap


def _choose_tiles(tb, S, H, itemsize, budget_bytes):
    """Pick (TS, TH): largest seq tile first, then largest hidden tile that fits."""
    ts_cands = _divisor_tiles(S, 128)
    th_cands = _divisor_tiles(H, 128)
    for ts in ts_cands:
        for th in th_cands:
            if tb * ts * th * itemsize <= budget_bytes:
                return ts, th
    # Indivisible / degenerate dims: fall back to the smallest legal blocks.
    return ts_cands[-1], th_cands[-1]


def mean_pooling(last_hidden_state, attention_mask, *, seq_block=None,
                 hidden_block=None, batch_block=None):
    """Pallas equivalent of MeanPooling.forward.

    last_hidden_state: (B, S, H) float
    attention_mask:    (B, S)    int/float/bool
    returns:           (B, H)    float32
    """
    B, S, H = last_hidden_state.shape
    assert attention_mask.shape == (B, S)

    if attention_mask.dtype == jnp.bool_:
        attention_mask = attention_mask.astype(jnp.int32)

    # Batch tiling: keep TB = 8 (pad with zero-mask rows if needed); a batch
    # smaller than 8 uses the full-dimension block (legal and tiny).
    orig_B = B
    if batch_block is not None:
        TB = batch_block
    elif B % 8 == 0:
        TB = 8
    elif B < 8:
        TB = B
    else:
        pad = (-B) % 8
        last_hidden_state = jnp.pad(last_hidden_state,
                                    ((0, pad), (0, 0), (0, 0)))
        attention_mask = jnp.pad(attention_mask, ((0, pad), (0, 0)))
        B = B + pad
        TB = 8
    assert B % TB == 0

    itemsize = jnp.dtype(last_hidden_state.dtype).itemsize
    mask_itemsize = jnp.dtype(attention_mask.dtype).itemsize

    budget, vmem_cap = _vmem_info()
    auto_ts, auto_th = _choose_tiles(TB, S, H, itemsize, budget)
    TS = seq_block if seq_block is not None else auto_ts
    TH = hidden_block if hidden_block is not None else auto_th
    assert S % TS == 0 and H % TH == 0

    grid = (B // TB, H // TH, S // TS)

    # Derive the scoped VMEM limit from what the pipeline actually uses
    # (double-buffered inputs/outputs) plus headroom, bounded by physical VMEM.
    hidden_blk = TB * TS * TH * itemsize
    mask_blk = TB * TS * mask_itemsize
    out_blk = TB * TH * 4
    vmem_needed = 2 * (hidden_blk + mask_blk + out_blk) + TB * 4
    vmem_limit = int(min(max(vmem_needed + 2 * 1024 * 1024,
                             32 * 1024 * 1024), vmem_cap))

    out = pl.pallas_call(
        _mean_pool_kernel,
        out_shape=jax.ShapeDtypeStruct((B, H), jnp.float32),
        grid_spec=pltpu.PrefetchScalarGridSpec(
            num_scalar_prefetch=0,
            grid=grid,
            in_specs=[
                pl.BlockSpec((TB, TS, TH), lambda b, h, s: (b, s, h)),
                pl.BlockSpec((TB, TS), lambda b, h, s: (b, s)),
            ],
            out_specs=pl.BlockSpec((TB, TH), lambda b, h, s: (b, h)),
            scratch_shapes=[pltpu.VMEM((TB, 1), jnp.float32)],
        ),
        compiler_params=pltpu.CompilerParams(
            # Batch/hidden tiles are independent (megacore split on v7x);
            # the sequence axis is the carried reduction.
            dimension_semantics=("parallel", "parallel", "arbitrary"),
            vmem_limit_bytes=vmem_limit,
        ),
        cost_estimate=pl.CostEstimate(
            flops=2 * B * S * H,
            transcendentals=0,
            bytes_accessed=B * S * H * itemsize + B * S * mask_itemsize
            + B * H * 4,
        ),
    )(last_hidden_state, attention_mask)

    return out[:orig_B] if orig_B != B else out


def _reference(last_hidden_state, attention_mask):
    m = attention_mask[..., None].astype(jnp.float32)
    s = jnp.sum(last_hidden_state.astype(jnp.float32) * m, axis=1)
    sm = jnp.maximum(jnp.sum(m, axis=1), 1e-9)
    return s / sm


if __name__ == "__main__":
    key = jax.random.PRNGKey(0)
    k1, k2, k3, k4 = jax.random.split(key, 4)

    # 1) Small but layout-representative: B=2, S=256, H=256; auto tiles
    #    (whole seq / hidden fit in one block -> single grid step).
    B, S, H = 2, 256, 256
    x = jax.random.normal(k1, (B, S, H), dtype=jnp.float32)
    mask = (jax.random.uniform(k2, (B, S)) > 0.3).astype(jnp.int32)
    ref = _reference(x, mask)
    out = jax.block_until_ready(mean_pooling(x, mask))
    np.testing.assert_allclose(np.asarray(out), np.asarray(ref),
                               rtol=1e-5, atol=1e-5)

    # 2) Forced seq + hidden tiling (grid = (1, 2, 2)) to exercise the
    #    init / accumulate / finalize reduction across the "arbitrary" axis
    #    and the hidden-dim grid axis.
    out2 = jax.block_until_ready(
        mean_pooling(x, mask, seq_block=128, hidden_block=128))
    np.testing.assert_allclose(np.asarray(out2), np.asarray(ref),
                               rtol=1e-5, atol=1e-5)

    # 3) Batch > 8 and not a multiple of 8: exercises zero-mask padding to
    #    TB=8, a multi-tile "parallel" batch axis, and an all-zero mask row
    #    (torch clamp(min=1e-9) behavior -> zeros).
    B3, S3, H3 = 10, 128, 128
    x3 = jax.random.normal(k3, (B3, S3, H3), dtype=jnp.float32)
    mask3 = (jax.random.uniform(k4, (B3, S3)) > 0.3).astype(jnp.int32)
    mask3 = mask3.at[3].set(0)
    ref3 = _reference(x3, mask3)
    out3 = jax.block_until_ready(mean_pooling(x3, mask3))
    np.testing.assert_allclose(np.asarray(out3), np.asarray(ref3),
                               rtol=1e-5, atol=1e-5)

    print("KERNEL_OK")
</pallas_src>

<mosaic_0001>
module attributes {stable_mosaic.version = 11 : i64} {
  func.func @_mean_pool_kernel(%arg0: i32, %arg1: i32, %arg2: i32, %arg3: memref<2x256x256xf32, #tpu.memory_space<vmem>>, %arg4: memref<2x256xi32, #tpu.memory_space<vmem>>, %arg5: memref<2x256xf32, #tpu.memory_space<vmem>>, %arg6: memref<2x1xf32, #tpu.memory_space<vmem>>) attributes {dimension_semantics = [#tpu.dimension_semantics<parallel>, #tpu.dimension_semantics<parallel>, #tpu.dimension_semantics<arbitrary>], iteration_bounds = array<i64: 1, 1, 1>, scalar_prefetch = 0 : i64, scratch_operands = 1 : i64, tpu.core_type = #tpu.core_type<tc>, window_params = [{transform_indices = @transform_0, window_bounds = array<i64: 2, 256, 256>}, {transform_indices = @transform_1, window_bounds = array<i64: 2, 256>}, {transform_indices = @transform_2, window_bounds = array<i64: 2, 256>}]} {
    %c0_i32 = arith.constant 0 : i32
    %0 = arith.cmpi eq, %arg2, %c0_i32 : i32
    %1 = arith.extui %0 : i1 to i32
    %c0_i32_0 = arith.constant 0 : i32
    %2 = arith.cmpi ne, %1, %c0_i32_0 : i32
    scf.if %2 {
      %cst_16 = arith.constant 0.000000e+00 : f32
      %21 = vector.broadcast %cst_16 : f32 to vector<2x256xf32>
      %c0_17 = arith.constant 0 : index
      %c0_18 = arith.constant 0 : index
      %22 = vector.load %arg5[%c0_17, %c0_18] : memref<2x256xf32, #tpu.memory_space<vmem>>, vector<2x256xf32>
      tpu.vector_store %arg5[%c0_17, %c0_18], %21 {strides = array<i32>} : memref<2x256xf32, #tpu.memory_space<vmem>>, vector<2x256xf32>,
      %cst_19 = arith.constant 0.000000e+00 : f32
      %23 = vector.broadcast %cst_19 : f32 to vector<2x1xf32>
      %c0_20 = arith.constant 0 : index
      %c0_21 = arith.constant 0 : index
      %24 = vector.load %arg6[%c0_20, %c0_21] : memref<2x1xf32, #tpu.memory_space<vmem>>, vector<2x1xf32>
      tpu.vector_store %arg6[%c0_20, %c0_21], %23 {strides = array<i32>} : memref<2x1xf32, #tpu.memory_space<vmem>>, vector<2x1xf32>,
    } else {
    }
    %c0 = arith.constant 0 : index
    %c0_1 = arith.constant 0 : index
    %c0_2 = arith.constant 0 : index
    %3 = vector.load %arg3[%c0, %c0_1, %c0_2] : memref<2x256x256xf32, #tpu.memory_space<vmem>>, vector<2x256x256xf32>
    %c0_3 = arith.constant 0 : index
    %c0_4 = arith.constant 0 : index
    %4 = vector.load %arg4[%c0_3, %c0_4] : memref<2x256xi32, #tpu.memory_space<vmem>>, vector<2x256xi32>
    %5 = arith.sitofp %4 : vector<2x256xi32> to vector<2x256xf32>
    %c0_5 = arith.constant 0 : index
    %c0_6 = arith.constant 0 : index
    %6 = vector.load %arg5[%c0_5, %c0_6] : memref<2x256xf32, #tpu.memory_space<vmem>>, vector<2x256xf32>
    %7 = vector.shape_cast %5 : vector<2x256xf32> to vector<2x256x1xf32>
    %8 = vector.broadcast %7 : vector<2x256x1xf32> to vector<2x256x256xf32>
    %9 = arith.mulf %3, %8 : vector<2x256x256xf32>
    %cst = arith.constant dense<0.000000e+00> : vector<2x256xf32>
    %10 = vector.multi_reduction <add>, %9, %cst [1] : vector<2x256x256xf32> to vector<2x256xf32>
    %11 = arith.addf %6, %10 : vector<2x256xf32>
    %c0_7 = arith.constant 0 : index
    %c0_8 = arith.constant 0 : index
    %12 = vector.load %arg5[%c0_7, %c0_8] : memref<2x256xf32, #tpu.memory_space<vmem>>, vector<2x256xf32>
    tpu.vector_store %arg5[%c0_7, %c0_8], %11 {strides = array<i32>} : memref<2x256xf32, #tpu.memory_space<vmem>>, vector<2x256xf32>,
    %c0_9 = arith.constant 0 : index
    %c0_10 = arith.constant 0 : index
    %13 = vector.load %arg6[%c0_9, %c0_10] : memref<2x1xf32, #tpu.memory_space<vmem>>, vector<2x1xf32>
    %cst_11 = arith.constant dense<0.000000e+00> : vector<2xf32>
    %14 = vector.multi_reduction <add>, %5, %cst_11 [1] : vector<2x256xf32> to vector<2xf32>
    %15 = vector.shape_cast %14 : vector<2xf32> to vector<2x1xf32>
    %16 = arith.addf %13, %15 : vector<2x1xf32>
    %c0_12 = arith.constant 0 : index
    %c0_13 = arith.constant 0 : index
    %17 = vector.load %arg6[%c0_12, %c0_13] : memref<2x1xf32, #tpu.memory_space<vmem>>, vector<2x1xf32>
    tpu.vector_store %arg6[%c0_12, %c0_13], %16 {strides = array<i32>} : memref<2x1xf32, #tpu.memory_space<vmem>>, vector<2x1xf32>,
    %c0_i32_14 = arith.constant 0 : i32
    %18 = arith.cmpi eq, %arg2, %c0_i32_14 : i32
    %19 = arith.extui %18 : i1 to i32
    %c0_i32_15 = arith.constant 0 : i32
    %20 = arith.cmpi ne, %19, %c0_i32_15 : i32
    scf.if %20 {
      %c0_16 = arith.constant 0 : index
      %c0_17 = arith.constant 0 : index
      %21 = vector.load %arg5[%c0_16, %c0_17] : memref<2x256xf32, #tpu.memory_space<vmem>>, vector<2x256xf32>
      %c0_18 = arith.constant 0 : index
      %c0_19 = arith.constant 0 : index
      %22 = vector.load %arg6[%c0_18, %c0_19] : memref<2x1xf32, #tpu.memory_space<vmem>>, vector<2x1xf32>
      %cst_20 = arith.constant 9.99999971E-10 : f32
      %23 = vector.broadcast %cst_20 : f32 to vector<2x1xf32>
      %24 = arith.maximumf %22, %23 : vector<2x1xf32>
      %25 = vector.broadcast %24 : vector<2x1xf32> to vector<2x256xf32>
      %26 = arith.divf %21, %25 : vector<2x256xf32>
      %c0_21 = arith.constant 0 : index
      %c0_22 = arith.constant 0 : index
      %27 = vector.load %arg5[%c0_21, %c0_22] : memref<2x256xf32, #tpu.memory_space<vmem>>, vector<2x256xf32>
      tpu.vector_store %arg5[%c0_21, %c0_22], %26 {strides = array<i32>} : memref<2x256xf32, #tpu.memory_space<vmem>>, vector<2x256xf32>,
    } else {
    }
    return
  }
  func.func @transform_0(%arg0: i32, %arg1: i32, %arg2: i32) -> (i32, i32, i32) {
    %c0_i32 = arith.constant 0 : i32
    return %arg0, %arg2, %arg1 : i32, i32, i32
  }
  func.func @transform_1(%arg0: i32, %arg1: i32, %arg2: i32) -> (i32, i32) {
    %c0_i32 = arith.constant 0 : i32
    return %arg0, %arg2 : i32, i32
  }
  func.func @transform_2(%arg0: i32, %arg1: i32, %arg2: i32) -> (i32, i32) {
    %c0_i32 = arith.constant 0 : i32
    return %arg0, %arg1 : i32, i32
  }
}

</mosaic_0001>

<llo_original>
// kernel: tpu_custom_call.1
$region0: #{tpu_custom_call.1}
  #allocation0 [shape = 'u32[]', space=smem, size = 0x4, offset = 0x4, fixed_abs, tag = 'smem constant byte address 0x4 - core index']
  #allocation1 [shape = 'u32[144,128]{1,0:T(1,128)}', space=vmem, size = 0x12000, scoped, tag = 'internal scratch']
  #allocation2 [shape = 'f32[2,1]{1,0:T(2,128)}', space=vmem, size = 0x400, scoped, tag = 'scratch operand']
  %s0 = inlined_call_operand.hbm [shape: f32[2,256,256], index: 0, kind: input, shape index: {}]
  %s1 = inlined_call_operand.hbm [shape: s32[2,256], index: 1, kind: input, shape index: {}]
  %s2 = inlined_call_operand.hbm [shape: f32[2,256], index: 2, kind: output, shape index: {}]
  %s3 = sld [smem:[#allocation0]]
  $region34: #{tpu_custom_call.1} parent=0
    _
  %s5 = ssub.s32 1, %s3
  %s6 = scalar_select 0, %s5, %s3
  $region1: #{tpu_custom_call.1} parent=0
    #allocation3 [shape = 'u8[524288]{0}', space=vmem, size = 0x80000, scoped, tag = 'input window, operand 0, single buffered']
    #allocation4 [shape = 's32[1]{0}', space=sflag, size = 0x4, scoped, tag = 'scoped memory for tpu_custom_call.1']
    #allocation5 [shape = 's32[1]{0}', space=sflag, size = 0x4, scoped, tag = 'scoped memory for tpu_custom_call.1']
    #allocation6 [shape = 'u8[2048]{0}', space=vmem, size = 0x800, scoped, tag = 'input window, operand 1, single buffered']
    #allocation7 [shape = 's32[1]{0}', space=sflag, size = 0x4, scoped, tag = 'scoped memory for tpu_custom_call.1']
    #allocation8 [shape = 'u8[2048]{0}', space=vmem, size = 0x800, scoped, tag = 'output window, operand 0, single buffered']
    %7 = vsyncpa [#allocation4], 0
    %8 = vsyncpa [#allocation7], 0
    %9 = vsyncpa [#allocation5], 0
    // Predicated region
    $region2: #{tpu_custom_call.1} parent=1 // pred_check
      _
    $region3: #{tpu_custom_call.1} parent=1 // pred_check_branch
      %11 = sbr.rel (0) target = $region5
    $region4: #{tpu_custom_call.1} parent=1 // pred_region
      %s13 = ssub.s32 16384, 16384
      %14 = vsyncadd [#allocation4], %s13
      %s15 = sshll.u32 [#allocation3], 4
      %s16 = int_to_ptr.vmem [resolvable:$true] %s15
      %21 = dma.hbm_to_vmem [thread:$0]  %s0, 16384, %s16, [#allocation4], 256, 256, 16
    $region5: #{tpu_custom_call.1} parent=1 // pred_fallthru
      _
    // Predicated region
    $region6: #{tpu_custom_call.1} parent=1 // pred_check
      _
    $region7: #{tpu_custom_call.1} parent=1 // pred_check_branch
      %23 = sbr.rel (0) target = $region9
    $region8: #{tpu_custom_call.1} parent=1 // pred_region
      %s25 = ssub.s32 64, 64
      %26 = vsyncadd [#allocation7], %s25
      %s28 = sshll.u32 [#allocation6], 4
      %s29 = int_to_ptr.vmem [resolvable:$true] %s28
      %31 = dma.hbm_to_vmem [thread:$0]  %s1, 64, %s29, [#allocation7]
    $region9: #{tpu_custom_call.1} parent=1 // pred_fallthru
      _
    // Predicated region
    $region10: #{tpu_custom_call.1} parent=1 // pred_check
      _
    $region11: #{tpu_custom_call.1} parent=1 // pred_check_branch
      %33 = sbr.rel (0) target = $region13
    $region12: #{tpu_custom_call.1} parent=1 // pred_region
      %34 = dma.done [#allocation4], 16384
    $region13: #{tpu_custom_call.1} parent=1 // pred_fallthru
      _
    // Predicated region
    $region14: #{tpu_custom_call.1} parent=1 // pred_check
      _
    $region15: #{tpu_custom_call.1} parent=1 // pred_check_branch
      %36 = sbr.rel (0) target = $region17
    $region16: #{tpu_custom_call.1} parent=1 // pred_region
      %37 = dma.done [#allocation7], 64
    $region17: #{tpu_custom_call.1} parent=1 // pred_fallthru
      _
    %p38 = scmp.eq.s32.totalorder 0, 0
    // Predicated region
    $region18: #{tpu_custom_call.1} parent=1 // pred_check
      %p39 = pneg %p38
    $region19: #{tpu_custom_call.1} parent=1 // pred_check_branch
      %41 = sbr.rel (%p39) target = $region21
    $region20: #{tpu_custom_call.1} parent=1 // pred_region
      %42 = vst [vmem:[#allocation8] sm:$0xf] 0.0
      %vm43 = vcmask 1024
      %44 = vst.msk [vmem:[#allocation2] sm:$0x3] %vm43, 0.0
    $region21: #{tpu_custom_call.1} parent=1 // pred_fallthru
      _
    %v45 = vld [vmem:[#allocation3] sm:$0xff]
    %v46 = vld [vmem:[#allocation3 + $0x8] sm:$0xff]
    %v47 = vld [vmem:[#allocation3 + $0x10] sm:$0xff]
    %v48 = vld [vmem:[#allocation3 + $0x18] sm:$0xff]
    %v49 = vld [vmem:[#allocation3 + $0x20] sm:$0xff]
    %v50 = vld [vmem:[#allocation3 + $0x28] sm:$0xff]
    %v51 = vld [vmem:[#allocation3 + $0x30] sm:$0xff]
    %v52 = vld [vmem:[#allocation3 + $0x38] sm:$0xff]
    %v53 = vld [vmem:[#allocation3 + $0x40] sm:$0xff]
    %v54 = vld [vmem:[#allocation3 + $0x48] sm:$0xff]
    %v55 = vld [vmem:[#allocation3 + $0x50] sm:$0xff]
    %v56 = vld [vmem:[#allocation3 + $0x58] sm:$0xff]
    %v57 = vld [vmem:[#allocation3 + $0x60] sm:$0xff]
    %v58 = vld [vmem:[#allocation3 + $0x68] sm:$0xff]
    %v59 = vld [vmem:[#allocation3 + $0x70] sm:$0xff]
    %v60 = vld [vmem:[#allocation3 + $0x78] sm:$0xff]
    %v61 = vld [vmem:[#allocation3 + $0x80] sm:$0xff]
    %v62 = vld [vmem:[#allocation3 + $0x88] sm:$0xff]
    %v63 = vld [vmem:[#allocation3 + $0x90] sm:$0xff]
    %v64 = vld [vmem:[#allocation3 + $0x98] sm:$0xff]
    %v65 = vld [vmem:[#allocation3 + $0xa0] sm:$0xff]
    %v66 = vld [vmem:[#allocation3 + $0xa8] sm:$0xff]
    %v67 = vld [vmem:[#allocation3 + $0xb0] sm:$0xff]
    %v68 = vld [vmem:[#allocation3 + $0xb8] sm:$0xff]
    %v69 = vld [vmem:[#allocation3 + $0xc0] sm:$0xff]
    %v70 = vld [vmem:[#allocation3 + $0xc8] sm:$0xff]
    %v71 = vld [vmem:[#allocation3 + $0xd0] sm:$0xff]
    %v72 = vld [vmem:[#allocation3 + $0xd8] sm:$0xff]
    %v73 = vld [vmem:[#allocation3 + $0xe0] sm:$0xff]
    %v74 = vld [vmem:[#allocation3 + $0xe8] sm:$0xff]
    %v75 = vld [vmem:[#allocation3 + $0xf0] sm:$0xff]
    %v76 = vld [vmem:[#allocation3 + $0xf8] sm:$0xff]
    %v77 = vld [vmem:[#allocation3 + $0x100] sm:$0xff]
    %v78 = vld [vmem:[#allocation3 + $0x108] sm:$0xff]
    %v79 = vld [vmem:[#allocation3 + $0x110] sm:$0xff]
    %v80 = vld [vmem:[#allocation3 + $0x118] sm:$0xff]
    %v81 = vld [vmem:[#allocation3 + $0x120] sm:$0xff]
    %v82 = vld [vmem:[#allocation3 + $0x128] sm:$0xff]
    %v83 = vld [vmem:[#allocation3 + $0x130] sm:$0xff]
    %v84 = vld [vmem:[#allocation3 + $0x138] sm:$0xff]
    %v85 = vld [vmem:[#allocation3 + $0x140] sm:$0xff]
    %v86 = vld [vmem:[#allocation3 + $0x148] sm:$0xff]
    %v87 = vld [vmem:[#allocation3 + $0x150] sm:$0xff]
    %v88 = vld [vmem:[#allocation3 + $0x158] sm:$0xff]
    %v89 = vld [vmem:[#allocation3 + $0x160] sm:$0xff]
    %v90 = vld [vmem:[#allocation3 + $0x168] sm:$0xff]
    %v91 = vld [vmem:[#allocation3 + $0x170] sm:$0xff]
    %v92 = vld [vmem:[#allocation3 + $0x178] sm:$0xff]
    %v93 = vld [vmem:[#allocation3 + $0x180] sm:$0xff]
    %v94 = vld [vmem:[#allocation3 + $0x188] sm:$0xff]
    %v95 = vld [vmem:[#allocation3 + $0x190] sm:$0xff]
    %v96 = vld [vmem:[#allocation3 + $0x198] sm:$0xff]
    %v97 = vld [vmem:[#allocation3 + $0x1a0] sm:$0xff]
    %v98 = vld [vmem:[#allocation3 + $0x1a8] sm:$0xff]
    %v99 = vld [vmem:[#allocation3 + $0x1b0] sm:$0xff]
    %v100 = vld [vmem:[#allocation3 + $0x1b8] sm:$0xff]
    %v101 = vld [vmem:[#allocation3 + $0x1c0] sm:$0xff]
    %v102 = vld [vmem:[#allocation3 + $0x1c8] sm:$0xff]
    %v103 = vld [vmem:[#allocation3 + $0x1d0] sm:$0xff]
    %v104 = vld [vmem:[#allocation3 + $0x1d8] sm:$0xff]
    %v105 = vld [vmem:[#allocation3 + $0x1e0] sm:$0xff]
    %v106 = vld [vmem:[#allocation3 + $0x1e8] sm:$0xff]
    %v107 = vld [vmem:[#allocation3 + $0x1f0] sm:$0xff]
    %v108 = vld [vmem:[#allocation3 + $0x1f8] sm:$0xff]
    %v109 = vld [vmem:[#allocation3 + $0x200] sm:$0xff]
    %v110 = vld [vmem:[#allocation3 + $0x208] sm:$0xff]
    %v111 = vld [vmem:[#allocation3 + $0x210] sm:$0xff]
    %v112 = vld [vmem:[#allocation3 + $0x218] sm:$0xff]
    %v113 = vld [vmem:[#allocation3 + $0x220] sm:$0xff]
    %v114 = vld [vmem:[#allocation3 + $0x228] sm:$0xff]
    %v115 = vld [vmem:[#allocation3 + $0x230] sm:$0xff]
    %v116 = vld [vmem:[#allocation3 + $0x238] sm:$0xff]
    %v117 = vld [vmem:[#allocation3 + $0x240] sm:$0xff]
    %v118 = vld [vmem:[#allocation3 + $0x248] sm:$0xff]
    %v119 = vld [vmem:[#allocation3 + $0x250] sm:$0xff]
    %v120 = vld [vmem:[#allocation3 + $0x258] sm:$0xff]
    %v121 = vld [vmem:[#allocation3 + $0x260] sm:$0xff]
    %v122 = vld [vmem:[#allocation3 + $0x268] sm:$0xff]
    %v123 = vld [vmem:[#allocation3 + $0x270] sm:$0xff]
    %v124 = vld [vmem:[#allocation3 + $0x278] sm:$0xff]
    %v125 = vld [vmem:[#allocation3 + $0x280] sm:$0xff]
    %v126 = vld [vmem:[#allocation3 + $0x288] sm:$0xff]
    %v127 = vld [vmem:[#allocation3 + $0x290] sm:$0xff]
    %v128 = vld [vmem:[#allocation3 + $0x298] sm:$0xff]
    %v129 = vld [vmem:[#allocation3 + $0x2a0] sm:$0xff]
    %v130 = vld [vmem:[#allocation3 + $0x2a8] sm:$0xff]
    %v131 = vld [vmem:[#allocation3 + $0x2b0] sm:$0xff]
    %v132 = vld [vmem:[#allocation3 + $0x2b8] sm:$0xff]
    %v133 = vld [vmem:[#allocation3 + $0x2c0] sm:$0xff]
    %v134 = vld [vmem:[#allocation3 + $0x2c8] sm:$0xff]
    %v135 = vld [vmem:[#allocation3 + $0x2d0] sm:$0xff]
    %v136 = vld [vmem:[#allocation3 + $0x2d8] sm:$0xff]
    %v137 = vld [vmem:[#allocation3 + $0x2e0] sm:$0xff]
    %v138 = vld [vmem:[#allocation3 + $0x2e8] sm:$0xff]
    %v139 = vld [vmem:[#allocation3 + $0x2f0] sm:$0xff]
    %v140 = vld [vmem:[#allocation3 + $0x2f8] sm:$0xff]
    %v141 = vld [vmem:[#allocation3 + $0x300] sm:$0xff]
    %v142 = vld [vmem:[#allocation3 + $0x308] sm:$0xff]
    %v143 = vld [vmem:[#allocation3 + $0x310] sm:$0xff]
    %v144 = vld [vmem:[#allocation3 + $0x318] sm:$0xff]
    %v145 = vld [vmem:[#allocation3 + $0x320] sm:$0xff]
    %v146 = vld [vmem:[#allocation3 + $0x328] sm:$0xff]
    %v147 = vld [vmem:[#allocation3 + $0x330] sm:$0xff]
    %v148 = vld [vmem:[#allocation3 + $0x338] sm:$0xff]
    %v149 = vld [vmem:[#allocation3 + $0x340] sm:$0xff]
    %v150 = vld [vmem:[#allocation3 + $0x348] sm:$0xff]
    %v151 = vld [vmem:[#allocation3 + $0x350] sm:$0xff]
    %v152 = vld [vmem:[#allocation3 + $0x358] sm:$0xff]
    %v153 = vld [vmem:[#allocation3 + $0x360] sm:$0xff]
    %v154 = vld [vmem:[#allocation3 + $0x368] sm:$0xff]
    %v155 = vld [vmem:[#allocation3 + $0x370] sm:$0xff]
    %v156 = vld [vmem:[#allocation3 + $0x378] sm:$0xff]
    %v157 = vld [vmem:[#allocation3 + $0x380] sm:$0xff]
    %v158 = vld [vmem:[#allocation3 + $0x388] sm:$0xff]
    %v159 = vld [vmem:[#allocation3 + $0x390] sm:$0xff]
    %v160 = vld [vmem:[#allocation3 + $0x398] sm:$0xff]
    %v161 = vld [vmem:[#allocation3 + $0x3a0] sm:$0xff]
    %v162 = vld [vmem:[#allocation3 + $0x3a8] sm:$0xff]
    %v163 = vld [vmem:[#allocation3 + $0x3b0] sm:$0xff]
    %v164 = vld [vmem:[#allocation3 + $0x3b8] sm:$0xff]
    %v165 = vld [vmem:[#allocation3 + $0x3c0] sm:$0xff]
    %v166 = vld [vmem:[#allocation3 + $0x3c8] sm:$0xff]
    %v167 = vld [vmem:[#allocation3 + $0x3d0] sm:$0xff]
    %v168 = vld [vmem:[#allocation3 + $0x3d8] sm:$0xff]
    %v169 = vld [vmem:[#allocation3 + $0x3e0] sm:$0xff]
    %v170 = vld [vmem:[#allocation3 + $0x3e8] sm:$0xff]
    %v171 = vld [vmem:[#allocation3 + $0x3f0] sm:$0xff]
    %v172 = vld [vmem:[#allocation3 + $0x3f8] sm:$0xff]
    %v173 = vld [vmem:[#allocation6] sm:$0xf]
    %v174 = vcvt.s32.f32 %v173
    %v175 = vld [vmem:[#allocation8] sm:$0xf]
    %v178 = vunpack.c.l.s4 1983009808
    %v179 = vunpack.c.0.s8 %v178
    %v180 = vlaneseq
    %v181 = vshrl.u32 %v180, 7
    %v182 = vsub.s32 %v179, %v181
    %v183 = vrot.slane %v174, %v182
    %v184 = vcombine.high %v183, %v183
    %v187 = vlaneseq
    %v188 = vshrl.u32 %v187, 7
    %v189 = vsub.s32 0, %v188
    %v190 = vrot.slane %v183, %v189
    %192 = vbcast.lane.b32.xlu0 %v190, 256
    %v193 = vpop.permute.xlu0 %192
    %s195 = sor.u32 256, 8
    %196 = vbcast.lane.b32.xlu0 %v190, %s195
    %v197 = vpop.permute.xlu0 %196
    %s199 = sor.u32 256, 16
    %200 = vbcast.lane.b32.xlu0 %v190, %s199
    %v201 = vpop.permute.xlu0 %200
    %s203 = sor.u32 256, 24
    %204 = vbcast.lane.b32.xlu0 %v190, %s203
    %v205 = vpop.permute.xlu0 %204
    %s207 = sor.u32 256, 32
    %208 = vbcast.lane.b32.xlu0 %v190, %s207
    %v209 = vpop.permute.xlu0 %208
    %s211 = sor.u32 256, 40
    %212 = vbcast.lane.b32.xlu0 %v190, %s211
    %v213 = vpop.permute.xlu0 %212
    %s215 = sor.u32 256, 48
    %216 = vbcast.lane.b32.xlu0 %v190, %s215
    %v217 = vpop.permute.xlu0 %216
    %s219 = sor.u32 256, 56
    %220 = vbcast.lane.b32.xlu0 %v190, %s219
    %v221 = vpop.permute.xlu0 %220
    %s223 = sor.u32 256, 64
    %224 = vbcast.lane.b32.xlu0 %v190, %s223
    %v225 = vpop.permute.xlu0 %224
    %s227 = sor.u32 256, 72
    %228 = vbcast.lane.b32.xlu0 %v190, %s227
    %v229 = vpop.permute.xlu0 %228
    %s231 = sor.u32 256, 80
    %232 = vbcast.lane.b32.xlu0 %v190, %s231
    %v233 = vpop.permute.xlu0 %232
    %s235 = sor.u32 256, 88
    %236 = vbcast.lane.b32.xlu0 %v190, %s235
    %v237 = vpop.permute.xlu0 %236
    %s239 = sor.u32 256, 96
    %240 = vbcast.lane.b32.xlu0 %v190, %s239
    %v241 = vpop.permute.xlu0 %240
    %s243 = sor.u32 256, 104
    %244 = vbcast.lane.b32.xlu0 %v190, %s243
    %v245 = vpop.permute.xlu0 %244
    %s247 = sor.u32 256, 112
    %248 = vbcast.lane.b32.xlu0 %v190, %s247
    %v249 = vpop.permute.xlu0 %248
    %s251 = sor.u32 256, 120
    %252 = vbcast.lane.b32.xlu0 %v190, %s251
    %v253 = vpop.permute.xlu0 %252
    %v254 = vlaneseq
    %v255 = vshrl.u32 %v254, 7
    %v256 = vsub.s32 0, %v255
    %v257 = vrot.slane %v184, %v256
    %259 = vbcast.lane.b32.xlu0 %v257, 256
    %v260 = vpop.permute.xlu0 %259
    %s262 = sor.u32 256, 8
    %263 = vbcast.lane.b32.xlu0 %v257, %s262
    %v264 = vpop.permute.xlu0 %263
    %s266 = sor.u32 256, 16
    %267 = vbcast.lane.b32.xlu0 %v257, %s266
    %v268 = vpop.permute.xlu0 %267
    %s270 = sor.u32 256, 24
    %271 = vbcast.lane.b32.xlu0 %v257, %s270
    %v272 = vpop.permute.xlu0 %271
    %s274 = sor.u32 256, 32
    %275 = vbcast.lane.b32.xlu0 %v257, %s274
    %v276 = vpop.permute.xlu0 %275
    %s278 = sor.u32 256, 40
    %279 = vbcast.lane.b32.xlu0 %v257, %s278
    %v280 = vpop.permute.xlu0 %279
    %s282 = sor.u32 256, 48
    %283 = vbcast.lane.b32.xlu0 %v257, %s282
    %v284 = vpop.permute.xlu0 %283
    %s286 = sor.u32 256, 56
    %287 = vbcast.lane.b32.xlu0 %v257, %s286
    %v288 = vpop.permute.xlu0 %287
    %s290 = sor.u32 256, 64
    %291 = vbcast.lane.b32.xlu0 %v257, %s290
    %v292 = vpop.permute.xlu0 %291
    %s294 = sor.u32 256, 72
    %295 = vbcast.lane.b32.xlu0 %v257, %s294
    %v296 = vpop.permute.xlu0 %295
    %s298 = sor.u32 256, 80
    %299 = vbcast.lane.b32.xlu0 %v257, %s298
    %v300 = vpop.permute.xlu0 %299
    %s302 = sor.u32 256, 88
    %303 = vbcast.lane.b32.xlu0 %v257, %s302
    %v304 = vpop.permute.xlu0 %303
    %s306 = sor.u32 256, 96
    %307 = vbcast.lane.b32.xlu0 %v257, %s306
    %v308 = vpop.permute.xlu0 %307
    %s310 = sor.u32 256, 104
    %311 = vbcast.lane.b32.xlu0 %v257, %s310
    %v312 = vpop.permute.xlu0 %311
    %s314 = sor.u32 256, 112
    %315 = vbcast.lane.b32.xlu0 %v257, %s314
    %v316 = vpop.permute.xlu0 %315
    %s318 = sor.u32 256, 120
    %319 = vbcast.lane.b32.xlu0 %v257, %s318
    %v320 = vpop.permute.xlu0 %319
    %v321 = vlaneseq
    %v322 = vshrl.u32 %v321, 7
    %v323 = vsub.s32 1, %v322
    %v324 = vrot.slane %v183, %v323
    %326 = vbcast.lane.b32.xlu0 %v324, 256
    %v327 = vpop.permute.xlu0 %326
    %s329 = sor.u32 256, 8
    %330 = vbcast.lane.b32.xlu0 %v324, %s329
    %v331 = vpop.permute.xlu0 %330
    %s333 = sor.u32 256, 16
    %334 = vbcast.lane.b32.xlu0 %v324, %s333
    %v335 = vpop.permute.xlu0 %334
    %s337 = sor.u32 256, 24
    %338 = vbcast.lane.b32.xlu0 %v324, %s337
    %v339 = vpop.permute.xlu0 %338
    %s341 = sor.u32 256, 32
    %342 = vbcast.lane.b32.xlu0 %v324, %s341
    %v343 = vpop.permute.xlu0 %342
    %s345 = sor.u32 256, 40
    %346 = vbcast.lane.b32.xlu0 %v324, %s345
    %v347 = vpop.permute.xlu0 %346
    %s349 = sor.u32 256, 48
    %350 = vbcast.lane.b32.xlu0 %v324, %s349
    %v351 = vpop.permute.xlu0 %350
    %s353 = sor.u32 256, 56
    %354 = vbcast.lane.b32.xlu0 %v324, %s353
    %v355 = vpop.permute.xlu0 %354
    %s357 = sor.u32 256, 64
    %358 = vbcast.lane.b32.xlu0 %v324, %s357
    %v359 = vpop.permute.xlu0 %358
    %s361 = sor.u32 256, 72
    %362 = vbcast.lane.b32.xlu0 %v324, %s361
    %v363 = vpop.permute.xlu0 %362
    %s365 = sor.u32 256, 80
    %366 = vbcast.lane.b32.xlu0 %v324, %s365
    %v367 = vpop.permute.xlu0 %366
    %s369 = sor.u32 256, 88
    %370 = vbcast.lane.b32.xlu0 %v324, %s369
    %v371 = vpop.permute.xlu0 %370
    %s373 = sor.u32 256, 96
    %374 = vbcast.lane.b32.xlu0 %v324, %s373
    %v375 = vpop.permute.xlu0 %374
    %s377 = sor.u32 256, 104
    %378 = vbcast.lane.b32.xlu0 %v324, %s377
    %v379 = vpop.permute.xlu0 %378
    %s381 = sor.u32 256, 112
    %382 = vbcast.lane.b32.xlu0 %v324, %s381
    %v383 = vpop.permute.xlu0 %382
    %s385 = sor.u32 256, 120
    %386 = vbcast.lane.b32.xlu0 %v324, %s385
    %v387 = vpop.permute.xlu0 %386
    %v388 = vlaneseq
    %v389 = vshrl.u32 %v388, 7
    %v390 = vsub.s32 1, %v389
    %v391 = vrot.slane %v184, %v390
    %393 = vbcast.lane.b32.xlu0 %v391, 256
    %v394 = vpop.permute.xlu0 %393
    %s396 = sor.u32 256, 8
    %397 = vbcast.lane.b32.xlu0 %v391, %s396
    %v398 = vpop.permute.xlu0 %397
    %s400 = sor.u32 256, 16
    %401 = vbcast.lane.b32.xlu0 %v391, %s400
    %v402 = vpop.permute.xlu0 %401
    %s404 = sor.u32 256, 24
    %405 = vbcast.lane.b32.xlu0 %v391, %s404
    %v406 = vpop.permute.xlu0 %405
    %s408 = sor.u32 256, 32
    %409 = vbcast.lane.b32.xlu0 %v391, %s408
    %v410 = vpop.permute.xlu0 %409
    %s412 = sor.u32 256, 40
    %413 = vbcast.lane.b32.xlu0 %v391, %s412
    %v414 = vpop.permute.xlu0 %413
    %s416 = sor.u32 256, 48
    %417 = vbcast.lane.b32.xlu0 %v391, %s416
    %v418 = vpop.permute.xlu0 %417
    %s420 = sor.u32 256, 56
    %421 = vbcast.lane.b32.xlu0 %v391, %s420
    %v422 = vpop.permute.xlu0 %421
    %s424 = sor.u32 256, 64
    %425 = vbcast.lane.b32.xlu0 %v391, %s424
    %v426 = vpop.permute.xlu0 %425
    %s428 = sor.u32 256, 72
    %429 = vbcast.lane.b32.xlu0 %v391, %s428
    %v430 = vpop.permute.xlu0 %429
    %s432 = sor.u32 256, 80
    %433 = vbcast.lane.b32.xlu0 %v391, %s432
    %v434 = vpop.permute.xlu0 %433
    %s436 = sor.u32 256, 88
    %437 = vbcast.lane.b32.xlu0 %v391, %s436
    %v438 = vpop.permute.xlu0 %437
    %s440 = sor.u32 256, 96
    %441 = vbcast.lane.b32.xlu0 %v391, %s440
    %v442 = vpop.permute.xlu0 %441
    %s444 = sor.u32 256, 104
    %445 = vbcast.lane.b32.xlu0 %v391, %s444
    %v446 = vpop.permute.xlu0 %445
    %s448 = sor.u32 256, 112
    %449 = vbcast.lane.b32.xlu0 %v391, %s448
    %v450 = vpop.permute.xlu0 %449
    %s452 = sor.u32 256, 120
    %453 = vbcast.lane.b32.xlu0 %v391, %s452
    %v454 = vpop.permute.xlu0 %453
    %v455 = vmul.f32 %v45, %v193
    %v456 = vmul.f32 %v46, %v193
    %v457 = vmul.f32 %v47, %v197
    %v458 = vmul.f32 %v48, %v197
    %v459 = vmul.f32 %v49, %v201
    %v460 = vmul.f32 %v50, %v201
    %v461 = vmul.f32 %v51, %v205
    %v462 = vmul.f32 %v52, %v205
    %v463 = vmul.f32 %v53, %v209
    %v464 = vmul.f32 %v54, %v209
    %v465 = vmul.f32 %v55, %v213
    %v466 = vmul.f32 %v56, %v213
    %v467 = vmul.f32 %v57, %v217
    %v468 = vmul.f32 %v58, %v217
    %v469 = vmul.f32 %v59, %v221
    %v470 = vmul.f32 %v60, %v221
    %v471 = vmul.f32 %v61, %v225
    %v472 = vmul.f32 %v62, %v225
    %v473 = vmul.f32 %v63, %v229
    %v474 = vmul.f32 %v64, %v229
    %v475 = vmul.f32 %v65, %v233
    %v476 = vmul.f32 %v66, %v233
    %v477 = vmul.f32 %v67, %v237
    %v478 = vmul.f32 %v68, %v237
    %v479 = vmul.f32 %v69, %v241
    %v480 = vmul.f32 %v70, %v241
    %v481 = vmul.f32 %v71, %v245
    %v482 = vmul.f32 %v72, %v245
    %v483 = vmul.f32 %v73, %v249
    %v484 = vmul.f32 %v74, %v249
    %v485 = vmul.f32 %v75, %v253
    %v486 = vmul.f32 %v76, %v253
    %v487 = vmul.f32 %v77, %v260
    %v488 = vmul.f32 %v78, %v260
    %v489 = vmul.f32 %v79, %v264
    %v490 = vmul.f32 %v80, %v264
    %v491 = vmul.f32 %v81, %v268
    %v492 = vmul.f32 %v82, %v268
    %v493 = vmul.f32 %v83, %v272
    %v494 = vmul.f32 %v84, %v272
    %v495 = vmul.f32 %v85, %v276
    %v496 = vmul.f32 %v86, %v276
    %v497 = vmul.f32 %v87, %v280
    %v498 = vmul.f32 %v88, %v280
    %v499 = vmul.f32 %v89, %v284
    %v500 = vmul.f32 %v90, %v284
    %v501 = vmul.f32 %v91, %v288
    %v502 = vmul.f32 %v92, %v288
    %v503 = vmul.f32 %v93, %v292
    %v504 = vmul.f32 %v94, %v292
    %v505 = vmul.f32 %v95, %v296
    %v506 = vmul.f32 %v96, %v296
    %v507 = vmul.f32 %v97, %v300
    %v508 = vmul.f32 %v98, %v300
    %v509 = vmul.f32 %v99, %v304
    %v510 = vmul.f32 %v100, %v304
    %v511 = vmul.f32 %v101, %v308
    %v512 = vmul.f32 %v102, %v308
    %v513 = vmul.f32 %v103, %v312
    %v514 = vmul.f32 %v104, %v312
    %v515 = vmul.f32 %v105, %v316
    %v516 = vmul.f32 %v106, %v316
    %v517 = vmul.f32 %v107, %v320
    %v518 = vmul.f32 %v108, %v320
    %v519 = vmul.f32 %v109, %v327
    %v520 = vmul.f32 %v110, %v327
    %v521 = vmul.f32 %v111, %v331
    %v522 = vmul.f32 %v112, %v331
    %v523 = vmul.f32 %v113, %v335
    %v524 = vmul.f32 %v114, %v335
    %v525 = vmul.f32 %v115, %v339
    %v526 = vmul.f32 %v116, %v339
    %v527 = vmul.f32 %v117, %v343
    %v528 = vmul.f32 %v118, %v343
    %v529 = vmul.f32 %v119, %v347
    %v530 = vmul.f32 %v120, %v347
    %v531 = vmul.f32 %v121, %v351
    %v532 = vmul.f32 %v122, %v351
    %v533 = vmul.f32 %v123, %v355
    %v534 = vmul.f32 %v124, %v355
    %v535 = vmul.f32 %v125, %v359
    %v536 = vmul.f32 %v126, %v359
    %v537 = vmul.f32 %v127, %v363
    %v538 = vmul.f32 %v128, %v363
    %v539 = vmul.f32 %v129, %v367
    %v540 = vmul.f32 %v130, %v367
    %v541 = vmul.f32 %v131, %v371
    %v542 = vmul.f32 %v132, %v371
    %v543 = vmul.f32 %v133, %v375
    %v544 = vmul.f32 %v134, %v375
    %v545 = vmul.f32 %v135, %v379
    %v546 = vmul.f32 %v136, %v379
    %v547 = vmul.f32 %v137, %v383
    %v548 = vmul.f32 %v138, %v383
    %v549 = vmul.f32 %v139, %v387
    %v550 = vmul.f32 %v140, %v387
    %v551 = vmul.f32 %v141, %v394
    %v552 = vmul.f32 %v142, %v394
    %v553 = vmul.f32 %v143, %v398
    %v554 = vmul.f32 %v144, %v398
    %v555 = vmul.f32 %v145, %v402
    %v556 = vmul.f32 %v146, %v402
    %v557 = vmul.f32 %v147, %v406
    %v558 = vmul.f32 %v148, %v406
    %v559 = vmul.f32 %v149, %v410
    %v560 = vmul.f32 %v150, %v410
    %v561 = vmul.f32 %v151, %v414
    %v562 = vmul.f32 %v152, %v414
    %v563 = vmul.f32 %v153, %v418
    %v564 = vmul.f32 %v154, %v418
    %v565 = vmul.f32 %v155, %v422
    %v566 = vmul.f32 %v156, %v422
    %v567 = vmul.f32 %v157, %v426
    %v568 = vmul.f32 %v158, %v426
    %v569 = vmul.f32 %v159, %v430
    %v570 = vmul.f32 %v160, %v430
    %v571 = vmul.f32 %v161, %v434
    %v572 = vmul.f32 %v162, %v434
    %v573 = vmul.f32 %v163, %v438
    %v574 = vmul.f32 %v164, %v438
    %v575 = vmul.f32 %v165, %v442
    %v576 = vmul.f32 %v166, %v442
    %v577 = vmul.f32 %v167, %v446
    %v578 = vmul.f32 %v168, %v446
    %v579 = vmul.f32 %v169, %v450
    %v580 = vmul.f32 %v170, %v450
    %v581 = vmul.f32 %v171, %v454
    %v582 = vmul.f32 %v172, %v454
    %v583 = vadd.f32 %v455, %v457
    %v584 = vadd.f32 %v583, %v459
    %v585 = vadd.f32 %v584, %v461
    %v586 = vadd.f32 %v585, %v463
    %v587 = vadd.f32 %v586, %v465
    %v588 = vadd.f32 %v587, %v467
    %v589 = vadd.f32 %v588, %v469
    %v590 = vadd.f32 %v589, %v471
    %v591 = vadd.f32 %v590, %v473
    %v592 = vadd.f32 %v591, %v475
    %v593 = vadd.f32 %v592, %v477
    %v594 = vadd.f32 %v593, %v479
    %v595 = vadd.f32 %v594, %v481
    %v596 = vadd.f32 %v595, %v483
    %v597 = vadd.f32 %v596, %v485
    %v598 = vadd.f32 %v597, %v487
    %v599 = vadd.f32 %v598, %v489
    %v600 = vadd.f32 %v599, %v491
    %v601 = vadd.f32 %v600, %v493
    %v602 = vadd.f32 %v601, %v495
    %v603 = vadd.f32 %v602, %v497
    %v604 = vadd.f32 %v603, %v499
    %v605 = vadd.f32 %v604, %v501
    %v606 = vadd.f32 %v605, %v503
    %v607 = vadd.f32 %v606, %v505
    %v608 = vadd.f32 %v607, %v507
    %v609 = vadd.f32 %v608, %v509
    %v610 = vadd.f32 %v609, %v511
    %v611 = vadd.f32 %v610, %v513
    %v612 = vadd.f32 %v611, %v515
    %v613 = vadd.f32 %v612, %v517
    %v614 = vrot.slane %v613, 4
    %v615 = vadd.f32 %v613, %v614
    %v616 = vrot.slane %v615, 2
    %v617 = vadd.f32 %v615, %v616
    %v618 = vrot.slane %v617, 1
    %v619 = vadd.f32 %v617, %v618
    %v620 = vadd.f32 %v456, %v458
    %v621 = vadd.f32 %v620, %v460
    %v622 = vadd.f32 %v621, %v462
    %v623 = vadd.f32 %v622, %v464
    %v624 = vadd.f32 %v623, %v466
    %v625 = vadd.f32 %v624, %v468
    %v626 = vadd.f32 %v625, %v470
    %v627 = vadd.f32 %v626, %v472
    %v628 = vadd.f32 %v627, %v474
    %v629 = vadd.f32 %v628, %v476
    %v630 = vadd.f32 %v629, %v478
    %v631 = vadd.f32 %v630, %v480
    %v632 = vadd.f32 %v631, %v482
    %v633 = vadd.f32 %v632, %v484
    %v634 = vadd.f32 %v633, %v486
    %v635 = vadd.f32 %v634, %v488
    %v636 = vadd.f32 %v635, %v490
    %v637 = vadd.f32 %v636, %v492
    %v638 = vadd.f32 %v637, %v494
    %v639 = vadd.f32 %v638, %v496
    %v640 = vadd.f32 %v639, %v498
    %v641 = vadd.f32 %v640, %v500
    %v642 = vadd.f32 %v641, %v502
    %v643 = vadd.f32 %v642, %v504
    %v644 = vadd.f32 %v643, %v506
    %v645 = vadd.f32 %v644, %v508
    %v646 = vadd.f32 %v645, %v510
    %v647 = vadd.f32 %v646, %v512
    %v648 = vadd.f32 %v647, %v514
    %v649 = vadd.f32 %v648, %v516
    %v650 = vadd.f32 %v649, %v518
    %v651 = vrot.slane %v650, 4
    %v652 = vadd.f32 %v650, %v651
    %v653 = vrot.slane %v652, 2
    %v654 = vadd.f32 %v652, %v653
    %v655 = vrot.slane %v654, 1
    %v656 = vadd.f32 %v654, %v655
    %v657 = vadd.f32 %v519, %v521
    %v658 = vadd.f32 %v657, %v523
    %v659 = vadd.f32 %v658, %v525
    %v660 = vadd.f32 %v659, %v527
    %v661 = vadd.f32 %v660, %v529
    %v662 = vadd.f32 %v661, %v531
    %v663 = vadd.f32 %v662, %v533
    %v664 = vadd.f32 %v663, %v535
    %v665 = vadd.f32 %v664, %v537
    %v666 = vadd.f32 %v665, %v539
    %v667 = vadd.f32 %v666, %v541
    %v668 = vadd.f32 %v667, %v543
    %v669 = vadd.f32 %v668, %v545
    %v670 = vadd.f32 %v669, %v547
    %v671 = vadd.f32 %v670, %v549
    %v672 = vadd.f32 %v671, %v551
    %v673 = vadd.f32 %v672, %v553
    %v674 = vadd.f32 %v673, %v555
    %v675 = vadd.f32 %v674, %v557
    %v676 = vadd.f32 %v675, %v559
    %v677 = vadd.f32 %v676, %v561
    %v678 = vadd.f32 %v677, %v563
    %v679 = vadd.f32 %v678, %v565
    %v680 = vadd.f32 %v679, %v567
    %v681 = vadd.f32 %v680, %v569
    %v682 = vadd.f32 %v681, %v571
    %v683 = vadd.f32 %v682, %v573
    %v684 = vadd.f32 %v683, %v575
    %v685 = vadd.f32 %v684, %v577
    %v686 = vadd.f32 %v685, %v579
    %v687 = vadd.f32 %v686, %v581
    %v688 = vrot.slane %v687, 4
    %v689 = vadd.f32 %v687, %v688
    %v690 = vrot.slane %v689, 2
    %v691 = vadd.f32 %v689, %v690
    %v692 = vrot.slane %v691, 1
    %v693 = vadd.f32 %v691, %v692
    %v694 = vadd.f32 %v520, %v522
    %v695 = vadd.f32 %v694, %v524
    %v696 = vadd.f32 %v695, %v526
    %v697 = vadd.f32 %v696, %v528
    %v698 = vadd.f32 %v697, %v530
    %v699 = vadd.f32 %v698, %v532
    %v700 = vadd.f32 %v699, %v534
    %v701 = vadd.f32 %v700, %v536
    %v702 = vadd.f32 %v701, %v538
    %v703 = vadd.f32 %v702, %v540
    %v704 = vadd.f32 %v703, %v542
    %v705 = vadd.f32 %v704, %v544
    %v706 = vadd.f32 %v705, %v546
    %v707 = vadd.f32 %v706, %v548
    %v708 = vadd.f32 %v707, %v550
    %v709 = vadd.f32 %v708, %v552
    %v710 = vadd.f32 %v709, %v554
    %v711 = vadd.f32 %v710, %v556
    %v712 = vadd.f32 %v711, %v558
    %v713 = vadd.f32 %v712, %v560
    %v714 = vadd.f32 %v713, %v562
    %v715 = vadd.f32 %v714, %v564
    %v716 = vadd.f32 %v715, %v566
    %v717 = vadd.f32 %v716, %v568
    %v718 = vadd.f32 %v717, %v570
    %v719 = vadd.f32 %v718, %v572
    %v720 = vadd.f32 %v719, %v574
    %v721 = vadd.f32 %v720, %v576
    %v722 = vadd.f32 %v721, %v578
    %v723 = vadd.f32 %v722, %v580
    %v724 = vadd.f32 %v723, %v582
    %v725 = vrot.slane %v724, 4
    %v726 = vadd.f32 %v724, %v725
    %v727 = vrot.slane %v726, 2
    %v728 = vadd.f32 %v726, %v727
    %v729 = vrot.slane %v728, 1
    %v730 = vadd.f32 %v728, %v729
    %v735 = vcombine.low %v619, %v656
    %v737 = vunpack.c.l.s4 1983009808
    %v738 = vunpack.c.0.s8 %v737
    %v739 = vlaneseq
    %v740 = vshrl.u32 %v739, 7
    %v741 = vsub.s32 %v738, %v740
    %v742 = vrot.slane %v735, %v741
    %v743 = vcombine.low %v693, %v730
    %v745 = vunpack.c.l.s4 1983009808
    %v746 = vunpack.c.0.s8 %v745
    %v747 = vlaneseq
    %v748 = vshrl.u32 %v747, 7
    %v749 = vsub.s32 %v746, %v748
    %v750 = vrot.slane %v743, %v749
    %vm751 = vcmask 1044484
    %v752 = vsel %vm751, %v742, %v742
    %vm753 = vcmask 1046534
    %v754 = vsel %vm753, %v742, %v752
    %v755 = vrot.slane %v750, 7
    %vm756 = vcmask 1041409
    %v757 = vsel %vm756, %v755, %v754
    %vm758 = vcmask 1043459
    %v759 = vsel %vm758, %v755, %v757
    %vm760 = vcmask 1045509
    %v761 = vsel %vm760, %v755, %v759
    %vm762 = vcmask 1047559
    %v763 = vsel %vm762, %v755, %v761
    %v765 = vadd.f32 %v175, %v763
    %766 = vst [vmem:[#allocation8] sm:$0xf] %v765
    %v767 = vld [vmem:[#allocation2] sm:$0x3]
    %vm768 = vcmask 1041408
    %v769 = vsel %vm768, %v183, 0.0
    %v770 = vsel %vm768, %v184, 0.0
    %v771 = vadd.f32 %v769, %v770
    %772 = vadd.xlane.f32.xlu0 %v771
    %v773 = vpop.xlane.xlu0 %772
    %v774 = vadd.f32 %v767, %v773
    %vm775 = vcmask 1024
    %776 = vst.msk [vmem:[#allocation2] sm:$0x3] %vm775, %v774
    // Predicated region
    $region22: #{tpu_custom_call.1} parent=1 // pred_check
      %p777 = pneg %p38
    $region23: #{tpu_custom_call.1} parent=1 // pred_check_branch
      %779 = sbr.rel (%p777) target = $region25
    $region24: #{tpu_custom_call.1} parent=1 // pred_region
      %v780 = vld [vmem:[#allocation8] sm:$0xf]
      %v781 = vld [vmem:[#allocation2] sm:$0x3]
      %v782 = vmax.f32 %v781, 1e-09
      %784 = vset.pattern.permute.xlu0 0
      %785 = vperm.xlu0 %784, %v782
      %v786 = vpop.permute.xlu0 %785
      %v788 = vunpack.c.l.s4 269488144
      %v789 = vunpack.c.0.s8 %v788
      %v790 = vlaneseq
      %v791 = vshrl.u32 %v790, 7
      %v792 = vsub.s32 %v789, %v791
      %v793 = vrot.slane %v786, %v792
      %v795 = vrcp.pop %v793
      %v796 = vmul.f32 %v780, %v795
      %797 = vst [vmem:[#allocation8] sm:$0xf] %v796
    $region25: #{tpu_custom_call.1} parent=1 // pred_fallthru
      _
    // Predicated region
    $region26: #{tpu_custom_call.1} parent=1 // pred_check
      _
    $region27: #{tpu_custom_call.1} parent=1 // pred_check_branch
      %799 = sbr.rel (0) target = $region29
    $region28: #{tpu_custom_call.1} parent=1 // pred_region
      %s801 = ssub.s32 64, 64
      %802 = vsyncadd [#allocation5], %s801
      %s804 = sshll.u32 [#allocation8], 4
      %s805 = int_to_ptr.vmem [resolvable:$true] %s804
      %807 = dma.vmem_to_hbm [thread:$0]  %s805, 64, %s2, [#allocation5]
    $region29: #{tpu_custom_call.1} parent=1 // pred_fallthru
      _
    // Predicated region
    $region30: #{tpu_custom_call.1} parent=1 // pred_check
      _
    $region31: #{tpu_custom_call.1} parent=1 // pred_check_branch
      %809 = sbr.rel (0) target = $region33
    $region32: #{tpu_custom_call.1} parent=1 // pred_region
      %810 = dma.done [#allocation5], 64
    $region33: #{tpu_custom_call.1} parent=1 // pred_fallthru
      _
    %811 = vsyncpa [#allocation4], 1
    %812 = vsyncpa [#allocation7], 1
    %813 = vsyncpa [#allocation5], 1

</llo_original>
